<compile_context>
chip_gen: v5e
topology: v5e:2x2
jax: 0.10.0
libtpu: 0.0.40
codegen_flags: <defaults>
</compile_context>

<pallas_src>
import functools
import math

import jax
import jax.numpy as jnp
from jax import lax
from jax.experimental import pallas as pl
from jax.experimental.pallas import tpu as pltpu

NEG_SLOPE = 0.01  # PyTorch nn.LeakyReLU default


def _leaky_relu(x):
    return jnp.where(x > 0, x, NEG_SLOPE * x)


def _lcm(a, b):
    return a * b // math.gcd(a, b)


def _pick_batch_tile(n, l_in, l_out, target_lanes=1024):
    """Pick a batch tile TB so the flattened lane widths (TB*L_in, TB*L_out)
    are BlockSpec-legal (multiples of 128, or full-extent when n <= granule)
    and reasonably large, while keeping the block-diagonal Linear weight small."""
    granule = _lcm(128 // math.gcd(128, l_in), 128 // math.gcd(128, l_out))
    if n <= granule:
        return n  # single block; full-extent blocks are always legal
    tb = granule
    while tb * 2 <= n and tb * 2 * max(l_in, l_out) <= target_lanes:
        tb *= 2
    return tb


def _contrastive_mlp_kernel(x_ref, wconv_ref, bconv_ref, wlinbd_ref, blinbd_ref,
                            out_ref, *, l_in):
    # x_ref     : (C_in, TB*L_in)         channel-major, batch*length on lanes
    # wconv_ref : (3, C_out, C_in)        tap-major conv weight
    # bconv_ref : (C_out, 1)              f32
    # wlinbd_ref: (TB*L_in, TB*L_out)     block-diagonal (TB copies of W_lin^T)
    # blinbd_ref: (1, TB*L_out)           f32, b_lin tiled TB times
    # out_ref   : (C_out, TB*L_out)       lane-dense output slab
    x = x_ref[...]                                  # (C_in, TB*L_in)
    cols = x.shape[1]

    # Conv1d(kernel_size=3, padding=1): taps via non-negative lane rotations on
    # the flattened (batch, length) axis.  The lane that crosses a per-sample
    # boundary (or wraps around) is exactly the zero-padding column -> mask it.
    lpos = lax.broadcasted_iota(jnp.int32, (1, cols), 1) % l_in
    zero = jnp.zeros((), x.dtype)
    x_prev = jnp.where(lpos == 0, zero, pltpu.roll(x, 1, 1))           # x[l-1]
    x_next = jnp.where(lpos == l_in - 1, zero, pltpu.roll(x, cols - 1, 1))  # x[l+1]

    acc = jnp.dot(wconv_ref[1], x, preferred_element_type=jnp.float32)
    acc += jnp.dot(wconv_ref[0], x_prev, preferred_element_type=jnp.float32)
    acc += jnp.dot(wconv_ref[2], x_next, preferred_element_type=jnp.float32)
    acc += bconv_ref[...]                           # (C_out, 1) lane broadcast
    h = _leaky_relu(acc)                            # (C_out, TB*L_in) f32

    # Linear over the length axis: single matmul against the block-diagonal
    # weight, so no in-kernel reshape/transpose is needed.
    h = h.astype(wlinbd_ref.dtype)
    z = jnp.dot(h, wlinbd_ref[...], preferred_element_type=jnp.float32)
    z += blinbd_ref[...]                            # (1, TB*L_out) broadcast
    z = _leaky_relu(z)                              # (C_out, TB*L_out) f32

    out_ref[...] = z.astype(out_ref.dtype)


def contrastive_mlp_forward(x, params, *, use_bf16=False):
    """x: (N, C_in, L_in).  Returns (N, C_out, L_out)."""
    w_conv = params["w_conv"]   # (C_out, C_in, 3)
    b_conv = params["b_conv"]   # (C_out,)
    w_lin = params["w_lin"]     # (L_out, L_in)
    b_lin = params["b_lin"]     # (L_out,)

    n, c_in, l_in = x.shape
    c_out = w_conv.shape[0]
    l_out = w_lin.shape[0]
    out_dtype = x.dtype
    mxu_dtype = jnp.bfloat16 if use_bf16 else jnp.float32

    tb = _pick_batch_tile(n, l_in, l_out)
    n_pad = pl.cdiv(n, tb) * tb
    if n_pad != n:
        x = jnp.pad(x, ((0, n_pad - n), (0, 0), (0, 0)))

    # Wrapper-side layout plumbing only: channel-major input with batch*length
    # flattened onto lanes; weights reorganized for the two in-kernel matmuls.
    x2 = jnp.transpose(x, (1, 0, 2)).reshape(c_in, n_pad * l_in).astype(mxu_dtype)
    w_conv_t = jnp.transpose(w_conv, (2, 0, 1)).astype(mxu_dtype)   # (3, C_out, C_in)
    b_conv_2d = b_conv.reshape(c_out, 1).astype(jnp.float32)
    w_lin_t = jnp.transpose(w_lin, (1, 0)).astype(mxu_dtype)        # (L_in, L_out)
    # Block-diagonal Linear weight: TB copies of w_lin_t along the diagonal.
    w_lin_bd = jnp.kron(jnp.eye(tb, dtype=w_lin_t.dtype), w_lin_t)  # (TB*L_in, TB*L_out)
    b_lin_bd = jnp.tile(b_lin.reshape(1, l_out).astype(jnp.float32), (1, tb))
    # TODO(synk): for very large L_in/L_out or huge batch tiles (not this
    # module's regime) the block-diagonal weight wastes MXU flops; switch to a
    # (C_out*TB, L_in) x (L_in, L_out) formulation with blocked w_lin instead.

    kernel = functools.partial(_contrastive_mlp_kernel, l_in=l_in)
    out2d = pl.pallas_call(
        kernel,
        out_shape=jax.ShapeDtypeStruct((c_out, n_pad * l_out), out_dtype),
        grid=(n_pad // tb,),
        in_specs=[
            pl.BlockSpec((c_in, tb * l_in), lambda g: (0, g)),
            # Constant block indices -> weights/biases DMA'd once, stay resident.
            pl.BlockSpec((3, c_out, c_in), lambda g: (0, 0, 0)),
            pl.BlockSpec((c_out, 1), lambda g: (0, 0)),
            pl.BlockSpec((tb * l_in, tb * l_out), lambda g: (0, 0)),
            pl.BlockSpec((1, tb * l_out), lambda g: (0, 0)),
        ],
        out_specs=pl.BlockSpec((c_out, tb * l_out), lambda g: (0, g)),
        compiler_params=pltpu.CompilerParams(
            dimension_semantics=("parallel",),
        ),
    )(x2, w_conv_t, b_conv_2d, w_lin_bd, b_lin_bd)

    # (C_out, N_pad*L_out) -> (N, C_out, L_out); drop batch padding.
    out = out2d.reshape(c_out, n_pad, l_out).transpose(1, 0, 2)
    return out[:n]


def init_params(key, in_channel, out_channel, in_length, out_length):
    k1, k2, k3, k4 = jax.random.split(key, 4)
    w_conv = jax.random.normal(k1, (out_channel, in_channel, 3), jnp.float32) * 0.1
    b_conv = jax.random.normal(k2, (out_channel,), jnp.float32) * 0.1
    w_lin = jax.random.normal(k3, (out_length, in_length), jnp.float32) * 0.1
    b_lin = jax.random.normal(k4, (out_length,), jnp.float32) * 0.1
    return {"w_conv": w_conv, "b_conv": b_conv, "w_lin": w_lin, "b_lin": b_lin}


def reference_forward(x, params):
    """Pure-JAX reference matching the PyTorch forward."""
    w_conv, b_conv = params["w_conv"], params["b_conv"]
    w_lin, b_lin = params["w_lin"], params["b_lin"]
    n, c_in, l_in = x.shape
    x_pad = jnp.pad(x, ((0, 0), (0, 0), (1, 1)))
    y = jnp.zeros((n, w_conv.shape[0], l_in), jnp.float32)
    for k in range(3):
        y = y + jnp.einsum("oi,nil->nol", w_conv[:, :, k], x_pad[:, :, k:k + l_in])
    y = y + b_conv[None, :, None]
    y = _leaky_relu(y)
    z = jnp.einsum("nol,ml->nom", y, w_lin) + b_lin[None, None, :]
    return _leaky_relu(z)


if __name__ == "__main__":
    # Small shapes consistent with the module: x is (batch, in_channel, in_length).
    batch, in_channel, out_channel = 2, 4, 8
    in_length, out_length = 16, 8

    key = jax.random.PRNGKey(0)
    kx, kp = jax.random.split(key)
    x = jax.random.normal(kx, (batch, in_channel, in_length), jnp.float32)
    params = init_params(kp, in_channel, out_channel, in_length, out_length)

    out = contrastive_mlp_forward(x, params)   # f32 path (strict check)
    out = jax.block_until_ready(out)

    ref = reference_forward(x, params)
    assert out.shape == (batch, out_channel, out_length)
    assert jnp.allclose(out, ref, atol=1e-4, rtol=1e-4)
    print("KERNEL_OK")
</pallas_src>

<mosaic_0001>
module attributes {stable_mosaic.version = 11 : i64} {
  func.func @_contrastive_mlp_kernel(%arg0: i32, %arg1: memref<4x32xf32, #tpu.memory_space<vmem>>, %arg2: memref<3x8x4xf32, #tpu.memory_space<vmem>>, %arg3: memref<8x1xf32, #tpu.memory_space<vmem>>, %arg4: memref<32x16xf32, #tpu.memory_space<vmem>>, %arg5: memref<1x16xf32, #tpu.memory_space<vmem>>, %arg6: memref<8x16xf32, #tpu.memory_space<vmem>>) attributes {dimension_semantics = [#tpu.dimension_semantics<parallel>], iteration_bounds = array<i64: 1>, scalar_prefetch = 0 : i64, scratch_operands = 0 : i64, tpu.core_type = #tpu.core_type<tc>, window_params = [{transform_indices = @transform_0, window_bounds = array<i64: 4, 32>}, {pipeline_mode = #tpu.pipeline_mode<synchronous>, transform_indices = @transform_1, window_bounds = array<i64: 3, 8, 4>}, {pipeline_mode = #tpu.pipeline_mode<synchronous>, transform_indices = @transform_2, window_bounds = array<i64: 8, 1>}, {pipeline_mode = #tpu.pipeline_mode<synchronous>, transform_indices = @transform_3, window_bounds = array<i64: 32, 16>}, {pipeline_mode = #tpu.pipeline_mode<synchronous>, transform_indices = @transform_4, window_bounds = array<i64: 1, 16>}, {transform_indices = @transform_5, window_bounds = array<i64: 8, 16>}]} {
    %c0 = arith.constant 0 : index
    %c0_0 = arith.constant 0 : index
    %0 = vector.load %arg1[%c0, %c0_0] : memref<4x32xf32, #tpu.memory_space<vmem>>, vector<4x32xf32>
    %1 = tpu.iota {dimensions = array<i32: 1>} : vector<1x32xi32>
    %c16_i32 = arith.constant 16 : i32
    %c0_i32 = arith.constant 0 : i32
    %2 = arith.cmpi eq, %c16_i32, %c0_i32 : i32
    %c1_i32 = arith.constant 1 : i32
    %3 = arith.select %2, %c1_i32, %c16_i32 : i32
    %4 = vector.broadcast %3 : i32 to vector<1x32xi32>
    %5 = arith.remsi %1, %4 : vector<1x32xi32>
    %c0_i32_1 = arith.constant 0 : i32
    %6 = vector.broadcast %c0_i32_1 : i32 to vector<1x32xi32>
    %7 = arith.cmpi ne, %5, %6 : vector<1x32xi32>
    %c0_i32_2 = arith.constant 0 : i32
    %8 = vector.broadcast %c0_i32_2 : i32 to vector<1x32xi32>
    %9 = arith.cmpi slt, %5, %8 : vector<1x32xi32>
    %c0_i32_3 = arith.constant 0 : i32
    %10 = arith.cmpi slt, %3, %c0_i32_3 : i32
    %11 = vector.broadcast %10 : i1 to vector<1x32xi1>
    %12 = vector.broadcast %11 : vector<1x32xi1> to vector<1x32xi1>
    %13 = arith.xori %9, %12 : vector<1x32xi1>
    %14 = arith.andi %13, %7 : vector<1x32xi1>
    %15 = vector.broadcast %3 : i32 to vector<1x32xi32>
    %16 = arith.addi %5, %15 : vector<1x32xi32>
    %17 = arith.select %14, %16, %5 : vector<1x32xi1>, vector<1x32xi32>
    %c0_i32_4 = arith.constant 0 : i32
    %18 = vector.broadcast %c0_i32_4 : i32 to vector<1x32xi32>
    %19 = arith.cmpi eq, %17, %18 : vector<1x32xi32>
    %c1_i32_5 = arith.constant 1 : i32
    %20 = tpu.dynamic_rotate %0 by %c1_i32_5 dim 1 : vector<4x32xf32>, i32 -> vector<4x32xf32>
    %cst = arith.constant 0.000000e+00 : f32
    %21 = vector.shape_cast %19 : vector<1x32xi1> to vector<1x32xi1>
    %22 = vector.broadcast %21 : vector<1x32xi1> to vector<4x32xi1>
    %23 = vector.broadcast %cst : f32 to vector<4x32xf32>
    %24 = arith.select %22, %23, %20 : vector<4x32xi1>, vector<4x32xf32>
    %c15_i32 = arith.constant 15 : i32
    %25 = vector.broadcast %c15_i32 : i32 to vector<1x32xi32>
    %26 = arith.cmpi eq, %17, %25 : vector<1x32xi32>
    %c31_i32 = arith.constant 31 : i32
    %27 = tpu.dynamic_rotate %0 by %c31_i32 dim 1 : vector<4x32xf32>, i32 -> vector<4x32xf32>
    %cst_6 = arith.constant 0.000000e+00 : f32
    %28 = vector.shape_cast %26 : vector<1x32xi1> to vector<1x32xi1>
    %29 = vector.broadcast %28 : vector<1x32xi1> to vector<4x32xi1>
    %30 = vector.broadcast %cst_6 : f32 to vector<4x32xf32>
    %31 = arith.select %29, %30, %27 : vector<4x32xi1>, vector<4x32xf32>
    %c1 = arith.constant 1 : index
    %c0_7 = arith.constant 0 : index
    %c0_8 = arith.constant 0 : index
    %32 = vector.load %arg2[%c1, %c0_7, %c0_8] : memref<3x8x4xf32, #tpu.memory_space<vmem>>, vector<1x8x4xf32>
    %33 = vector.shape_cast %32 : vector<1x8x4xf32> to vector<8x4xf32>
    %cst_9 = arith.constant dense<0.000000e+00> : vector<8x32xf32>
    %34 = tpu.matmul %33, %0, %cst_9 {dimension_numbers = #tpu.dot_dimension_numbers<[1], [0], [0], [1], [0, 0, 1, 1], [], []>} : vector<8x4xf32>, vector<4x32xf32>, vector<8x32xf32> -> vector<8x32xf32>
    %c0_10 = arith.constant 0 : index
    %c0_11 = arith.constant 0 : index
    %c0_12 = arith.constant 0 : index
    %35 = vector.load %arg2[%c0_10, %c0_11, %c0_12] : memref<3x8x4xf32, #tpu.memory_space<vmem>>, vector<1x8x4xf32>
    %36 = vector.shape_cast %35 : vector<1x8x4xf32> to vector<8x4xf32>
    %cst_13 = arith.constant dense<0.000000e+00> : vector<8x32xf32>
    %37 = tpu.matmul %36, %24, %cst_13 {dimension_numbers = #tpu.dot_dimension_numbers<[1], [0], [0], [1], [0, 0, 1, 1], [], []>} : vector<8x4xf32>, vector<4x32xf32>, vector<8x32xf32> -> vector<8x32xf32>
    %38 = arith.addf %34, %37 : vector<8x32xf32>
    %c2 = arith.constant 2 : index
    %c0_14 = arith.constant 0 : index
    %c0_15 = arith.constant 0 : index
    %39 = vector.load %arg2[%c2, %c0_14, %c0_15] : memref<3x8x4xf32, #tpu.memory_space<vmem>>, vector<1x8x4xf32>
    %40 = vector.shape_cast %39 : vector<1x8x4xf32> to vector<8x4xf32>
    %cst_16 = arith.constant dense<0.000000e+00> : vector<8x32xf32>
    %41 = tpu.matmul %40, %31, %cst_16 {dimension_numbers = #tpu.dot_dimension_numbers<[1], [0], [0], [1], [0, 0, 1, 1], [], []>} : vector<8x4xf32>, vector<4x32xf32>, vector<8x32xf32> -> vector<8x32xf32>
    %42 = arith.addf %38, %41 : vector<8x32xf32>
    %c0_17 = arith.constant 0 : index
    %c0_18 = arith.constant 0 : index
    %43 = vector.load %arg3[%c0_17, %c0_18] : memref<8x1xf32, #tpu.memory_space<vmem>>, vector<8x1xf32>
    %44 = vector.broadcast %43 : vector<8x1xf32> to vector<8x32xf32>
    %45 = arith.addf %42, %44 : vector<8x32xf32>
    %cst_19 = arith.constant 0.000000e+00 : f32
    %46 = vector.broadcast %cst_19 : f32 to vector<8x32xf32>
    %47 = arith.cmpf ogt, %45, %46 : vector<8x32xf32>
    %cst_20 = arith.constant 0.00999999977 : f32
    %48 = vector.broadcast %cst_20 : f32 to vector<8x32xf32>
    %49 = arith.mulf %48, %45 : vector<8x32xf32>
    %50 = arith.select %47, %45, %49 : vector<8x32xi1>, vector<8x32xf32>
    %c0_21 = arith.constant 0 : index
    %c0_22 = arith.constant 0 : index
    %51 = vector.load %arg4[%c0_21, %c0_22] : memref<32x16xf32, #tpu.memory_space<vmem>>, vector<32x16xf32>
    %cst_23 = arith.constant dense<0.000000e+00> : vector<8x16xf32>
    %52 = tpu.matmul %50, %51, %cst_23 {dimension_numbers = #tpu.dot_dimension_numbers<[1], [0], [0], [1], [0, 0, 1, 1], [], []>} : vector<8x32xf32>, vector<32x16xf32>, vector<8x16xf32> -> vector<8x16xf32>
    %c0_24 = arith.constant 0 : index
    %c0_25 = arith.constant 0 : index
    %53 = vector.load %arg5[%c0_24, %c0_25] : memref<1x16xf32, #tpu.memory_space<vmem>>, vector<1x16xf32>
    %54 = vector.broadcast %53 : vector<1x16xf32> to vector<8x16xf32>
    %55 = arith.addf %52, %54 : vector<8x16xf32>
    %cst_26 = arith.constant 0.000000e+00 : f32
    %56 = vector.broadcast %cst_26 : f32 to vector<8x16xf32>
    %57 = arith.cmpf ogt, %55, %56 : vector<8x16xf32>
    %cst_27 = arith.constant 0.00999999977 : f32
    %58 = vector.broadcast %cst_27 : f32 to vector<8x16xf32>
    %59 = arith.mulf %58, %55 : vector<8x16xf32>
    %60 = arith.select %57, %55, %59 : vector<8x16xi1>, vector<8x16xf32>
    %c0_28 = arith.constant 0 : index
    %c0_29 = arith.constant 0 : index
    %61 = vector.load %arg6[%c0_28, %c0_29] : memref<8x16xf32, #tpu.memory_space<vmem>>, vector<8x16xf32>
    tpu.vector_store %arg6[%c0_28, %c0_29], %60 {strides = array<i32>} : memref<8x16xf32, #tpu.memory_space<vmem>>, vector<8x16xf32>,
    return
  }
  func.func @transform_0(%arg0: i32) -> (i32, i32) {
    %c0_i32 = arith.constant 0 : i32
    %c0_i32_0 = arith.constant 0 : i32
    return %c0_i32, %arg0 : i32, i32
  }
  func.func @transform_1(%arg0: i32) -> (i32, i32, i32) {
    %c0_i32 = arith.constant 0 : i32
    %c0_i32_0 = arith.constant 0 : i32
    %c0_i32_1 = arith.constant 0 : i32
    %c0_i32_2 = arith.constant 0 : i32
    return %c0_i32, %c0_i32_0, %c0_i32_1 : i32, i32, i32
  }
  func.func @transform_2(%arg0: i32) -> (i32, i32) {
    %c0_i32 = arith.constant 0 : i32
    %c0_i32_0 = arith.constant 0 : i32
    %c0_i32_1 = arith.constant 0 : i32
    return %c0_i32, %c0_i32_0 : i32, i32
  }
  func.func @transform_3(%arg0: i32) -> (i32, i32) {
    %c0_i32 = arith.constant 0 : i32
    %c0_i32_0 = arith.constant 0 : i32
    %c0_i32_1 = arith.constant 0 : i32
    return %c0_i32, %c0_i32_0 : i32, i32
  }
  func.func @transform_4(%arg0: i32) -> (i32, i32) {
    %c0_i32 = arith.constant 0 : i32
    %c0_i32_0 = arith.constant 0 : i32
    %c0_i32_1 = arith.constant 0 : i32
    return %c0_i32, %c0_i32_0 : i32, i32
  }
  func.func @transform_5(%arg0: i32) -> (i32, i32) {
    %c0_i32 = arith.constant 0 : i32
    %c0_i32_0 = arith.constant 0 : i32
    return %c0_i32, %arg0 : i32, i32
  }
}

</mosaic_0001>

<llo_original>
// kernel: tpu_custom_call.1
$region0: #{tpu_custom_call.1}
  #allocation0 [shape = 'u32[]', space=smem, size = 0x4, offset = 0x4, fixed_abs, tag = 'smem constant byte address 0x4 - core index']
  #allocation1 [shape = 'u32[72,128]{1,0:T(1,128)}', space=vmem, size = 0x9000, scoped, tag = 'internal scratch']
  %s0 = inlined_call_operand.vmem [shape: f32[4,32], index: 0, kind: input, shape index: {}]
  %s1 = inlined_call_operand.vmem [shape: f32[3,8,4], index: 1, kind: input, shape index: {}]
  %s2 = inlined_call_operand.vmem [shape: f32[8,1], index: 2, kind: input, shape index: {}]
  %s3 = inlined_call_operand.vmem [shape: f32[32,16], index: 3, kind: input, shape index: {}]
  %s4 = inlined_call_operand.vmem [shape: f32[1,16], index: 4, kind: input, shape index: {}]
  %s5 = inlined_call_operand.hbm [shape: f32[8,16], index: 5, kind: output, shape index: {}]
  %s6 = sld [smem:[#allocation0]]
  $region30: #{tpu_custom_call.1} parent=0
    _
  %s8 = ssub.s32 1, %s6
  %s9 = scalar_select 0, %s8, %s6
  $region1: #{tpu_custom_call.1} parent=0
    #allocation2 [shape = 'u8[4096]{0}', space=vmem, size = 0x1000, scoped, tag = 'output window, operand 0, single buffered']
    #allocation3 [shape = 's32[1]{0}', space=sflag, size = 0x4, scoped, tag = 'scoped memory for tpu_custom_call.1']
    %10 = vsyncpa [#allocation3], 0
    // Predicated region
    $region2: #{tpu_custom_call.1} parent=1 // pred_check
      _
    $region3: #{tpu_custom_call.1} parent=1 // pred_check_branch
      %12 = sbr.rel (0) target = $region5
    $region4: #{tpu_custom_call.1} parent=1 // pred_region
      _
    $region5: #{tpu_custom_call.1} parent=1 // pred_fallthru
      _
    // Predicated region
    $region6: #{tpu_custom_call.1} parent=1 // pred_check
      _
    $region7: #{tpu_custom_call.1} parent=1 // pred_check_branch
      %14 = sbr.rel (0) target = $region9
    $region8: #{tpu_custom_call.1} parent=1 // pred_region
      _
    $region9: #{tpu_custom_call.1} parent=1 // pred_fallthru
      _
    // Predicated region
    $region10: #{tpu_custom_call.1} parent=1 // pred_check
      _
    $region11: #{tpu_custom_call.1} parent=1 // pred_check_branch
      %16 = sbr.rel (0) target = $region13
    $region12: #{tpu_custom_call.1} parent=1 // pred_region
      _
    $region13: #{tpu_custom_call.1} parent=1 // pred_fallthru
      _
    // Predicated region
    $region14: #{tpu_custom_call.1} parent=1 // pred_check
      _
    $region15: #{tpu_custom_call.1} parent=1 // pred_check_branch
      %18 = sbr.rel (0) target = $region17
    $region16: #{tpu_custom_call.1} parent=1 // pred_region
      _
    $region17: #{tpu_custom_call.1} parent=1 // pred_fallthru
      _
    // Predicated region
    $region18: #{tpu_custom_call.1} parent=1 // pred_check
      _
    $region19: #{tpu_custom_call.1} parent=1 // pred_check_branch
      %20 = sbr.rel (0) target = $region21
    $region20: #{tpu_custom_call.1} parent=1 // pred_region
      _
    $region21: #{tpu_custom_call.1} parent=1 // pred_fallthru
      _
    %v21 = vld [vmem:[%s0] sm:$0xf]
    %v22 = vlaneseq
    %v23 = vand.u32 %v22, 127
    %vm24 = vcmp.lt.s32.totalorder %v23, 0
    %v25 = vsub.s32 0, %v23
    %v26 = vsel %vm24, %v25, %v23
    %v27 = vshrl.u32 %v26, 4
    %v28 = vand.u32 %v26, 15
    %v29 = vsub.s32 0, %v28
    %v30 = vsel %vm24, %v29, %v28
    %vm31 = vcmp.ne.s32.totalorder %v30, 0
    %vm32 = vcmp.lt.s32.totalorder %v30, 0
    %vm33 = vmand %vm32, %vm31
    %v34 = vadd.s32 %v30, 16
    %v35 = vsel %vm33, %v34, %v30
    %vm36 = vcmp.eq.s32.totalorder %v35, 0
    %vm37 = vcmask 1047808
    %38 = vrot.lane.b32.xlu0 %v21, 32
    %v39 = vpop.permute.xlu0 %38
    %v40 = vsel %vm37, %v39, %v21
    %41 = vrot.lane.b32.xlu0 %v40, 32
    %v42 = vpop.permute.xlu0 %41
    %v43 = vsel %vm37, %v42, %v21
    %v44 = vsel %vm36, 1, 0
    %vm45 = vcmp.eq.s32.totalorder %v44, 1
    %47 = vrot.lane.b32.xlu0 %v43, 97
    %v48 = vpop.permute.xlu0 %47
    %v50 = vsel %vm45, 0.0, %v48
    %vm51 = vcmp.eq.s32.totalorder %v35, 15
    %v52 = vsel %vm51, 1, 0
    %vm53 = vcmp.eq.s32.totalorder %v52, 1
    %54 = vrot.lane.b32.xlu0 %v43, 127
    %v55 = vpop.permute.xlu0 %54
    %v57 = vsel %vm53, 0.0, %v55
    %s58 = scalar_lea.vmem %s1, 8
    %v59 = vld [vmem:[%s58] sm:$0xff]
    %v60 = vld [vmem:[%s1] sm:$0xff]
    %vm61 = vcmask 31744
    %v63 = vsel %vm61, %v60, 0
    %vm65 = vcmask 1043456
    %v67 = vsel %vm65, %v50, 0
    %69 = vmatpush.msra.mxu0 0.0
    %70 = vmatpush.msra.mxu0 0.0
    %71 = vmatpush.msra.mxu0 0.0
    %72 = vmatpush.msra.mxu0 0.0
    %73 = vmatpush.msra.mxu0 0.0
    %74 = vmatpush.msra.mxu0 0.0
    %75 = vmatpush.msra.mxu0 0.0
    %76 = vmatpush.msra.mxu0 0.0
    %77 = vmatpush.msra.mxu0 0.0
    %78 = vmatpush.msra.mxu0 0.0
    %79 = vmatpush.msra.mxu0 0.0
    %80 = vmatpush.msra.mxu0 0.0
    %81 = vmatpush.msra.mxu0 0.0
    %82 = vmatpush.msra.mxu0 0.0
    %83 = vmatpush.msra.mxu0 0.0
    %84 = vmatpush.msra.mxu0 %v67
    %85 = vmatmul.f32.gmra.mxu0 %v63
    %v86 = vpop.f32.mrf.mxu0
    %v87 = vadd.f32 0.0, %v86
    %88 = vdwg.mxu0
    %v90 = vsel %vm61, %v59, 0
    %v93 = vsel %vm65, %v21, 0
    %95 = vmatpush.msra.mxu0 0.0
    %96 = vmatpush.msra.mxu0 0.0
    %97 = vmatpush.msra.mxu0 0.0
    %98 = vmatpush.msra.mxu0 0.0
    %99 = vmatpush.msra.mxu0 0.0
    %100 = vmatpush.msra.mxu0 0.0
    %101 = vmatpush.msra.mxu0 0.0
    %102 = vmatpush.msra.mxu0 0.0
    %103 = vmatpush.msra.mxu0 0.0
    %104 = vmatpush.msra.mxu0 0.0
    %105 = vmatpush.msra.mxu0 0.0
    %106 = vmatpush.msra.mxu0 0.0
    %107 = vmatpush.msra.mxu0 0.0
    %108 = vmatpush.msra.mxu0 0.0
    %109 = vmatpush.msra.mxu0 0.0
    %110 = vmatpush.msra.mxu0 %v93
    %111 = vmatmul.f32.gmra.mxu0 %v90
    %v112 = vpop.f32.mrf.mxu0
    %v113 = vadd.f32 %v87, %v112
    %114 = vdwg.mxu0
    %s115 = scalar_lea.vmem %s1, 16
    %v116 = vld [vmem:[%s115] sm:$0xff]
    %v118 = vsel %vm61, %v116, 0
    %v121 = vsel %vm65, %v57, 0
    %123 = vmatpush.msra.mxu0 0.0
    %124 = vmatpush.msra.mxu0 0.0
    %125 = vmatpush.msra.mxu0 0.0
    %126 = vmatpush.msra.mxu0 0.0
    %127 = vmatpush.msra.mxu0 0.0
    %128 = vmatpush.msra.mxu0 0.0
    %129 = vmatpush.msra.mxu0 0.0
    %130 = vmatpush.msra.mxu0 0.0
    %131 = vmatpush.msra.mxu0 0.0
    %132 = vmatpush.msra.mxu0 0.0
    %133 = vmatpush.msra.mxu0 0.0
    %134 = vmatpush.msra.mxu0 0.0
    %135 = vmatpush.msra.mxu0 0.0
    %136 = vmatpush.msra.mxu0 0.0
    %137 = vmatpush.msra.mxu0 0.0
    %138 = vmatpush.msra.mxu0 %v121
    %139 = vmatmul.f32.gmra.mxu0 %v118
    %v140 = vpop.f32.mrf.mxu0
    %v141 = vadd.f32 0.0, %v140
    %142 = vdwg.mxu0
    %v143 = vadd.f32 %v113, %v141
    %v144 = vld [vmem:[%s2] sm:$0xff]
    %146 = vset.pattern.permute.xlu0 0
    %147 = vperm.xlu0 %146, %v144
    %v148 = vpop.permute.xlu0 %147
    %v150 = vadd.f32 %v143, %v148
    %vm151 = vcmp.gt.f32.partialorder %v150, 0.0
    %v152 = vmul.f32 %v150, 0.01
    %v153 = vsel %vm151, %v150, %v152
    %v154 = vld [vmem:[%s3] sm:$0xff]
    %v155 = vld [vmem:[%s3 + $0x8] sm:$0xff]
    %v156 = vld [vmem:[%s3 + $0x10] sm:$0xff]
    %v157 = vld [vmem:[%s3 + $0x18] sm:$0xff]
    %v158 = vld [vmem:[%s4] sm:$0x1]
    %v160 = vperm.slane %v158, 0
    %vm162 = vcmask 261120
    %v164 = vsel %vm162, %v153, 0
    %166 = vmatpush.msra.mxu0 0.0
    %167 = vmatpush.msra.mxu0 0.0
    %168 = vmatpush.msra.mxu0 0.0
    %169 = vmatpush.msra.mxu0 0.0
    %170 = vmatpush.msra.mxu0 0.0
    %171 = vmatpush.msra.mxu0 0.0
    %172 = vmatpush.msra.mxu0 0.0
    %173 = vmatpush.msra.mxu0 0.0
    %174 = vmatpush.msra.mxu0 0.0
    %175 = vmatpush.msra.mxu0 0.0
    %176 = vmatpush.msra.mxu0 0.0
    %177 = vmatpush.msra.mxu0 0.0
    %178 = vmatpush.msra.mxu0 %v157
    %179 = vmatpush.msra.mxu0 %v156
    %180 = vmatpush.msra.mxu0 %v155
    %181 = vmatpush.msra.mxu0 %v154
    %182 = vmatmul.f32.gmra.mxu0 %v164
    %v183 = vpop.f32.mrf.mxu0
    %v184 = vadd.f32 %v160, %v183
    %185 = vdwg.mxu0
    %vm186 = vcmp.gt.f32.partialorder %v184, 0.0
    %v187 = vmul.f32 %v184, 0.01
    %v188 = vsel %vm186, %v184, %v187
    %vm189 = vcmask 130048
    %190 = vst.msk [vmem:[#allocation2] sm:$0xff] %vm189, %v188
    // Predicated region
    $region22: #{tpu_custom_call.1} parent=1 // pred_check
      _
    $region23: #{tpu_custom_call.1} parent=1 // pred_check_branch
      %192 = sbr.rel (0) target = $region25
    $region24: #{tpu_custom_call.1} parent=1 // pred_region
      %194 = vsyncadd [#allocation3], 0
      %s196 = sshll.u32 [#allocation2], 4
      %s197 = int_to_ptr.vmem [resolvable:$true] %s196
      %s198 = sshll.u32 %s5, 4
      %s199 = int_to_ptr.hbm [resolvable:$true] %s198
      %201 = dma.vmem_to_hbm [thread:$0]  %s197, 128, %s199, [#allocation3]
    $region25: #{tpu_custom_call.1} parent=1 // pred_fallthru
      _
    // Predicated region
    $region26: #{tpu_custom_call.1} parent=1 // pred_check
      _
    $region27: #{tpu_custom_call.1} parent=1 // pred_check_branch
      %203 = sbr.rel (0) target = $region29
    $region28: #{tpu_custom_call.1} parent=1 // pred_region
      %205 = dma.done [#allocation3], 128
    $region29: #{tpu_custom_call.1} parent=1 // pred_fallthru
      _
    %206 = vsyncpa [#allocation3], 1

</llo_original>
